<compile_context>
chip_gen: v7x
topology: tpu7x:2x2x1
jax: 0.10.0
libtpu: 0.0.40
codegen_flags: <defaults>
</compile_context>

<pallas_src>
import jax
import jax.numpy as jnp
from jax import lax
from jax.experimental import pallas as pl
from jax.experimental.pallas import tpu as pltpu

EPS = 1e-5  # PyTorch BatchNorm1d default eps


def _round_up(n, m):
    return ((n + m - 1) // m) * m


def qry_tower_kernel(x_ref, w1_ref, b1_ref, w2_ref, b2_ref, w3_ref, b3_ref, out_ref):
    # x rows are pre-scaled by mask/len in the glue, so the mean over tokens is
    # just a sum over the token (sublane) axis.
    avg = jnp.sum(x_ref[...], axis=1)                                   # (TB, E)

    # fc1 (+ folded bn1) -> relu -> (dropout = identity in eval)
    h = jnp.dot(avg, w1_ref[...], preferred_element_type=jnp.float32) + b1_ref[...]
    h = jnp.maximum(h, 0.0)

    # fc2 (+ folded bn2) -> relu -> (dropout = identity in eval)
    h = jnp.dot(h, w2_ref[...], preferred_element_type=jnp.float32) + b2_ref[...]
    h = jnp.maximum(h, 0.0)

    # fc3
    out = jnp.dot(h, w3_ref[...], preferred_element_type=jnp.float32) + b3_ref[...]
    out_ref[...] = out.astype(out_ref.dtype)


def qry_tower(x_scaled, params, *, block_b=256, x_tile_vmem_budget=8 << 20):
    """x_scaled: (B, T, E) token embeddings already multiplied by mask/len."""
    B, T, E = x_scaled.shape
    H = params["w1"].shape[1]

    # --- fold BatchNorm (inference) into the Linear weights, in f32 ---
    s1 = params["g1"] * lax.rsqrt(params["v1"] + EPS)                  # (1, H)
    w1f = params["w1"] * s1                                            # (E, H)
    b1f = (params["b1"] - params["m1"]) * s1 + params["be1"]           # (1, H)
    s2 = params["g2"] * lax.rsqrt(params["v2"] + EPS)
    w2f = params["w2"] * s2                                            # (H, H)
    b2f = (params["b2"] - params["m2"]) * s2 + params["be2"]           # (1, H)
    w3, b3 = params["w3"], params["b3"]

    # --- batch tile: multiple of 8 sublanes, capped by block_b and by a VMEM
    #     budget for the double-buffered (TB, T, E) f32 input tile ---
    bytes_per_row = T * E * 4 * 2  # f32, double-buffered
    vmem_cap = max(8, (x_tile_vmem_budget // max(bytes_per_row, 1)) // 8 * 8)
    TB = min(block_b, vmem_cap, _round_up(B, 8))
    B_pad = _round_up(B, TB)
    if B_pad != B:
        x_scaled = jnp.pad(x_scaled, ((0, B_pad - B), (0, 0), (0, 0)))
    num_tiles = B_pad // TB

    def const_spec(shape):
        nd = len(shape)
        return pl.BlockSpec(shape, lambda i, _nd=nd: (0,) * _nd)

    out = pl.pallas_call(
        qry_tower_kernel,
        out_shape=jax.ShapeDtypeStruct((B_pad, H), jnp.float32),
        grid=(num_tiles,),
        in_specs=[
            pl.BlockSpec((TB, T, E), lambda i: (i, 0, 0)),   # x: tiled over batch
            const_spec(w1f.shape),                           # weights stay resident
            const_spec(b1f.shape),
            const_spec(w2f.shape),
            const_spec(b2f.shape),
            const_spec(w3.shape),
            const_spec(b3.shape),
        ],
        out_specs=pl.BlockSpec((TB, H), lambda i: (i, 0)),
        compiler_params=pltpu.CompilerParams(
            dimension_semantics=("parallel",),               # megacore-shard on v7x
        ),
    )(x_scaled, w1f, b1f, w2f, b2f, w3, b3)

    return out[:B]


def _reference(x_masked, inv_len, p):
    """Unfused JAX reference with explicit BN (eval) math."""
    avg = jnp.sum(x_masked, axis=1) * inv_len
    h = avg @ p["w1"] + p["b1"]
    h = (h - p["m1"]) / jnp.sqrt(p["v1"] + EPS) * p["g1"] + p["be1"]
    h = jnp.maximum(h, 0.0)
    h = h @ p["w2"] + p["b2"]
    h = (h - p["m2"]) / jnp.sqrt(p["v2"] + EPS) * p["g2"] + p["be2"]
    h = jnp.maximum(h, 0.0)
    return h @ p["w3"] + p["b3"]


if __name__ == "__main__":
    B, T, E, H, V = 4, 8, 32, 128, 50   # batch, max seq, embedding_dim, hidden_size, vocab

    key = jax.random.PRNGKey(0)
    ks = jax.random.split(key, 16)

    # Deterministic synthetic embedding table + token indices (variable lengths).
    emb_table = jax.random.normal(ks[0], (V, E), jnp.float32)
    lengths = jnp.array([3, 8, 5, 6], dtype=jnp.int32)
    token_idx = jax.random.randint(ks[1], (B, T), 0, V)
    mask = (jnp.arange(T)[None, :] < lengths[:, None]).astype(jnp.float32)

    # Glue (stays in JAX): embedding gather, zero padded positions, and fold
    # 1/len into the mask so the kernel's pooling is a plain sum. Clamp length
    # >= 1 so zero-length queries cannot produce inf/nan.
    inv_len = 1.0 / jnp.maximum(lengths, 1).astype(jnp.float32)        # (B,)
    x_masked = emb_table[token_idx] * mask[:, :, None]                 # (B, T, E)
    x_scaled = emb_table[token_idx] * (mask * inv_len[:, None])[:, :, None]

    # Deterministic parameter init (shapes follow nn.Linear / nn.BatchNorm1d,
    # weights stored (in, out) so the kernel computes x @ W).
    params = {
        "w1": 0.05 * jax.random.normal(ks[2], (E, H), jnp.float32),
        "b1": 0.05 * jax.random.normal(ks[3], (1, H), jnp.float32),
        "g1": jax.random.uniform(ks[4], (1, H), jnp.float32, 0.5, 1.5),
        "be1": 0.1 * jax.random.normal(ks[5], (1, H), jnp.float32),
        "m1": 0.1 * jax.random.normal(ks[6], (1, H), jnp.float32),
        "v1": jax.random.uniform(ks[7], (1, H), jnp.float32, 0.5, 1.5),
        "w2": 0.05 * jax.random.normal(ks[8], (H, H), jnp.float32),
        "b2": 0.05 * jax.random.normal(ks[9], (1, H), jnp.float32),
        "g2": jax.random.uniform(ks[10], (1, H), jnp.float32, 0.5, 1.5),
        "be2": 0.1 * jax.random.normal(ks[11], (1, H), jnp.float32),
        "m2": 0.1 * jax.random.normal(ks[12], (1, H), jnp.float32),
        "v2": jax.random.uniform(ks[13], (1, H), jnp.float32, 0.5, 1.5),
        "w3": 0.05 * jax.random.normal(ks[14], (H, H), jnp.float32),
        "b3": 0.05 * jax.random.normal(ks[15], (1, H), jnp.float32),
    }

    out = qry_tower(x_scaled, params)
    out = jax.block_until_ready(out)

    ref = _reference(x_masked, inv_len[:, None], params)
    assert out.shape == (B, H)
    assert jnp.allclose(out, ref, atol=1e-4, rtol=1e-4), "mismatch vs JAX reference"

    print("KERNEL_OK")
</pallas_src>

<mosaic_0001>
module attributes {stable_mosaic.version = 11 : i64} {
  func.func @qry_tower_kernel(%arg0: i32, %arg1: memref<8x8x32xf32, #tpu.memory_space<vmem>>, %arg2: memref<32x128xf32, #tpu.memory_space<vmem>>, %arg3: memref<1x128xf32, #tpu.memory_space<vmem>>, %arg4: memref<128x128xf32, #tpu.memory_space<vmem>>, %arg5: memref<1x128xf32, #tpu.memory_space<vmem>>, %arg6: memref<128x128xf32, #tpu.memory_space<vmem>>, %arg7: memref<1x128xf32, #tpu.memory_space<vmem>>, %arg8: memref<8x128xf32, #tpu.memory_space<vmem>>) attributes {dimension_semantics = [#tpu.dimension_semantics<parallel>], iteration_bounds = array<i64: 1>, scalar_prefetch = 0 : i64, scratch_operands = 0 : i64, tpu.core_type = #tpu.core_type<tc>, window_params = [{transform_indices = @transform_0, window_bounds = array<i64: 8, 8, 32>}, {pipeline_mode = #tpu.pipeline_mode<synchronous>, transform_indices = @transform_1, window_bounds = array<i64: 32, 128>}, {pipeline_mode = #tpu.pipeline_mode<synchronous>, transform_indices = @transform_2, window_bounds = array<i64: 1, 128>}, {pipeline_mode = #tpu.pipeline_mode<synchronous>, transform_indices = @transform_3, window_bounds = array<i64: 128, 128>}, {pipeline_mode = #tpu.pipeline_mode<synchronous>, transform_indices = @transform_4, window_bounds = array<i64: 1, 128>}, {pipeline_mode = #tpu.pipeline_mode<synchronous>, transform_indices = @transform_5, window_bounds = array<i64: 128, 128>}, {pipeline_mode = #tpu.pipeline_mode<synchronous>, transform_indices = @transform_6, window_bounds = array<i64: 1, 128>}, {transform_indices = @transform_7, window_bounds = array<i64: 8, 128>}]} {
    %c0 = arith.constant 0 : index
    %c0_0 = arith.constant 0 : index
    %c0_1 = arith.constant 0 : index
    %0 = vector.load %arg1[%c0, %c0_0, %c0_1] : memref<8x8x32xf32, #tpu.memory_space<vmem>>, vector<8x8x32xf32>
    %cst = arith.constant dense<0.000000e+00> : vector<8x32xf32>
    %1 = vector.multi_reduction <add>, %0, %cst [1] : vector<8x8x32xf32> to vector<8x32xf32>
    %c0_2 = arith.constant 0 : index
    %c0_3 = arith.constant 0 : index
    %2 = vector.load %arg2[%c0_2, %c0_3] : memref<32x128xf32, #tpu.memory_space<vmem>>, vector<32x128xf32>
    %cst_4 = arith.constant dense<0.000000e+00> : vector<8x128xf32>
    %3 = tpu.matmul %1, %2, %cst_4 {dimension_numbers = #tpu.dot_dimension_numbers<[1], [0], [0], [1], [0, 0, 1, 1], [], []>} : vector<8x32xf32>, vector<32x128xf32>, vector<8x128xf32> -> vector<8x128xf32>
    %c0_5 = arith.constant 0 : index
    %c0_6 = arith.constant 0 : index
    %4 = vector.load %arg3[%c0_5, %c0_6] : memref<1x128xf32, #tpu.memory_space<vmem>>, vector<1x128xf32>
    %5 = vector.broadcast %4 : vector<1x128xf32> to vector<8x128xf32>
    %6 = arith.addf %3, %5 : vector<8x128xf32>
    %cst_7 = arith.constant 0.000000e+00 : f32
    %7 = vector.broadcast %cst_7 : f32 to vector<8x128xf32>
    %8 = arith.maximumf %6, %7 : vector<8x128xf32>
    %c0_8 = arith.constant 0 : index
    %c0_9 = arith.constant 0 : index
    %9 = vector.load %arg4[%c0_8, %c0_9] : memref<128x128xf32, #tpu.memory_space<vmem>>, vector<128x128xf32>
    %cst_10 = arith.constant dense<0.000000e+00> : vector<8x128xf32>
    %10 = tpu.matmul %8, %9, %cst_10 {dimension_numbers = #tpu.dot_dimension_numbers<[1], [0], [0], [1], [0, 0, 1, 1], [], []>} : vector<8x128xf32>, vector<128x128xf32>, vector<8x128xf32> -> vector<8x128xf32>
    %c0_11 = arith.constant 0 : index
    %c0_12 = arith.constant 0 : index
    %11 = vector.load %arg5[%c0_11, %c0_12] : memref<1x128xf32, #tpu.memory_space<vmem>>, vector<1x128xf32>
    %12 = vector.broadcast %11 : vector<1x128xf32> to vector<8x128xf32>
    %13 = arith.addf %10, %12 : vector<8x128xf32>
    %cst_13 = arith.constant 0.000000e+00 : f32
    %14 = vector.broadcast %cst_13 : f32 to vector<8x128xf32>
    %15 = arith.maximumf %13, %14 : vector<8x128xf32>
    %c0_14 = arith.constant 0 : index
    %c0_15 = arith.constant 0 : index
    %16 = vector.load %arg6[%c0_14, %c0_15] : memref<128x128xf32, #tpu.memory_space<vmem>>, vector<128x128xf32>
    %cst_16 = arith.constant dense<0.000000e+00> : vector<8x128xf32>
    %17 = tpu.matmul %15, %16, %cst_16 {dimension_numbers = #tpu.dot_dimension_numbers<[1], [0], [0], [1], [0, 0, 1, 1], [], []>} : vector<8x128xf32>, vector<128x128xf32>, vector<8x128xf32> -> vector<8x128xf32>
    %c0_17 = arith.constant 0 : index
    %c0_18 = arith.constant 0 : index
    %18 = vector.load %arg7[%c0_17, %c0_18] : memref<1x128xf32, #tpu.memory_space<vmem>>, vector<1x128xf32>
    %19 = vector.broadcast %18 : vector<1x128xf32> to vector<8x128xf32>
    %20 = arith.addf %17, %19 : vector<8x128xf32>
    %c0_19 = arith.constant 0 : index
    %c0_20 = arith.constant 0 : index
    %21 = vector.load %arg8[%c0_19, %c0_20] : memref<8x128xf32, #tpu.memory_space<vmem>>, vector<8x128xf32>
    tpu.vector_store %arg8[%c0_19, %c0_20], %20 {strides = array<i32>} : memref<8x128xf32, #tpu.memory_space<vmem>>, vector<8x128xf32>,
    return
  }
  func.func @transform_0(%arg0: i32) -> (i32, i32, i32) {
    %c0_i32 = arith.constant 0 : i32
    %c0_i32_0 = arith.constant 0 : i32
    %c0_i32_1 = arith.constant 0 : i32
    return %arg0, %c0_i32, %c0_i32_0 : i32, i32, i32
  }
  func.func @transform_1(%arg0: i32) -> (i32, i32) {
    %c0_i32 = arith.constant 0 : i32
    %c0_i32_0 = arith.constant 0 : i32
    %c0_i32_1 = arith.constant 0 : i32
    return %c0_i32, %c0_i32_0 : i32, i32
  }
  func.func @transform_2(%arg0: i32) -> (i32, i32) {
    %c0_i32 = arith.constant 0 : i32
    %c0_i32_0 = arith.constant 0 : i32
    %c0_i32_1 = arith.constant 0 : i32
    return %c0_i32, %c0_i32_0 : i32, i32
  }
  func.func @transform_3(%arg0: i32) -> (i32, i32) {
    %c0_i32 = arith.constant 0 : i32
    %c0_i32_0 = arith.constant 0 : i32
    %c0_i32_1 = arith.constant 0 : i32
    return %c0_i32, %c0_i32_0 : i32, i32
  }
  func.func @transform_4(%arg0: i32) -> (i32, i32) {
    %c0_i32 = arith.constant 0 : i32
    %c0_i32_0 = arith.constant 0 : i32
    %c0_i32_1 = arith.constant 0 : i32
    return %c0_i32, %c0_i32_0 : i32, i32
  }
  func.func @transform_5(%arg0: i32) -> (i32, i32) {
    %c0_i32 = arith.constant 0 : i32
    %c0_i32_0 = arith.constant 0 : i32
    %c0_i32_1 = arith.constant 0 : i32
    return %c0_i32, %c0_i32_0 : i32, i32
  }
  func.func @transform_6(%arg0: i32) -> (i32, i32) {
    %c0_i32 = arith.constant 0 : i32
    %c0_i32_0 = arith.constant 0 : i32
    %c0_i32_1 = arith.constant 0 : i32
    return %c0_i32, %c0_i32_0 : i32, i32
  }
  func.func @transform_7(%arg0: i32) -> (i32, i32) {
    %c0_i32 = arith.constant 0 : i32
    %c0_i32_0 = arith.constant 0 : i32
    return %arg0, %c0_i32 : i32, i32
  }
}

</mosaic_0001>

<llo_original>
// kernel: tpu_custom_call.1
$region0: #{tpu_custom_call.1}
  #allocation0 [shape = 'u32[]', space=smem, size = 0x4, offset = 0x4, fixed_abs, tag = 'smem constant byte address 0x4 - core index']
  #allocation1 [shape = 'u32[144,128]{1,0:T(1,128)}', space=vmem, size = 0x12000, scoped, tag = 'internal scratch']
  %s0 = inlined_call_operand.hbm [shape: f32[8,8,32], index: 0, kind: input, shape index: {}]
  %s1 = inlined_call_operand.hbm [shape: f32[32,128], index: 1, kind: input, shape index: {}]
  %s2 = inlined_call_operand.vmem [shape: f32[1,128], index: 2, kind: input, shape index: {}]
  %s3 = inlined_call_operand.hbm [shape: f32[128,128], index: 3, kind: input, shape index: {}]
  %s4 = inlined_call_operand.vmem [shape: f32[1,128], index: 4, kind: input, shape index: {}]
  %s5 = inlined_call_operand.hbm [shape: f32[128,128], index: 5, kind: input, shape index: {}]
  %s6 = inlined_call_operand.vmem [shape: f32[1,128], index: 6, kind: input, shape index: {}]
  %s7 = inlined_call_operand.hbm [shape: f32[8,128], index: 7, kind: output, shape index: {}]
  %s8 = sld [smem:[#allocation0]]
  $region54: #{tpu_custom_call.1} parent=0
    _
  %s10 = ssub.s32 1, %s8
  %s11 = scalar_select 0, %s10, %s8
  $region1: #{tpu_custom_call.1} parent=0
    #allocation2 [shape = 'u8[32768]{0}', space=vmem, size = 0x8000, scoped, tag = 'input window, operand 0, single buffered']
    #allocation3 [shape = 's32[1]{0}', space=sflag, size = 0x4, scoped, tag = 'scoped memory for tpu_custom_call.1']
    #allocation4 [shape = 's32[1]{0}', space=sflag, size = 0x4, scoped, tag = 'scoped memory for tpu_custom_call.1']
    #allocation5 [shape = 'u8[16384]{0}', space=vmem, size = 0x4000, scoped, tag = 'input window, operand 1, single buffered']
    #allocation6 [shape = 's32[1]{0}', space=sflag, size = 0x4, scoped, tag = 'scoped memory for tpu_custom_call.1']
    #allocation7 [shape = 'u8[65536]{0}', space=vmem, size = 0x10000, scoped, tag = 'input window, operand 3, single buffered']
    #allocation8 [shape = 'u8[65536]{0}', space=vmem, size = 0x10000, scoped, tag = 'input window, operand 5, single buffered']
    #allocation9 [shape = 's32[1]{0}', space=sflag, size = 0x4, scoped, tag = 'scoped memory for tpu_custom_call.1']
    #allocation10 [shape = 'u8[4096]{0}', space=vmem, size = 0x1000, scoped, tag = 'output window, operand 0, single buffered']
    %12 = vsyncpa [#allocation3], 0
    %13 = vsyncpa [#allocation6], 0
    %14 = vsyncpa [#allocation9], 0
    %15 = vsyncpa [#allocation4], 0
    // Predicated region
    $region2: #{tpu_custom_call.1} parent=1 // pred_check
      _
    $region3: #{tpu_custom_call.1} parent=1 // pred_check_branch
      %17 = sbr.rel (0) target = $region5
    $region4: #{tpu_custom_call.1} parent=1 // pred_region
      %s19 = ssub.s32 1024, 1024
      %20 = vsyncadd [#allocation3], %s19
      %s21 = sshll.u32 [#allocation2], 4
      %s22 = int_to_ptr.vmem [resolvable:$true] %s21
      %27 = dma.hbm_to_vmem [thread:$0]  %s0, 1024, %s22, [#allocation3], 128, 128, 8
    $region5: #{tpu_custom_call.1} parent=1 // pred_fallthru
      _
    // Predicated region
    $region6: #{tpu_custom_call.1} parent=1 // pred_check
      _
    $region7: #{tpu_custom_call.1} parent=1 // pred_check_branch
      %29 = sbr.rel (0) target = $region9
    $region8: #{tpu_custom_call.1} parent=1 // pred_region
      %s31 = ssub.s32 512, 512
      %32 = vsyncadd [#allocation6], %s31
      %s33 = sshll.u32 [#allocation5], 4
      %s34 = int_to_ptr.vmem [resolvable:$true] %s33
      %39 = dma.hbm_to_vmem [thread:$0]  %s1, 512, %s34, [#allocation6], 128, 128, 8
    $region9: #{tpu_custom_call.1} parent=1 // pred_fallthru
      _
    // Predicated region
    $region10: #{tpu_custom_call.1} parent=1 // pred_check
      _
    $region11: #{tpu_custom_call.1} parent=1 // pred_check_branch
      %41 = sbr.rel (0) target = $region13
    $region12: #{tpu_custom_call.1} parent=1 // pred_region
      _
    $region13: #{tpu_custom_call.1} parent=1 // pred_fallthru
      _
    // Predicated region
    $region14: #{tpu_custom_call.1} parent=1 // pred_check
      _
    $region15: #{tpu_custom_call.1} parent=1 // pred_check_branch
      %43 = sbr.rel (0) target = $region17
    $region16: #{tpu_custom_call.1} parent=1 // pred_region
      %s45 = ssub.s32 2048, 2048
      %46 = vsyncadd [#allocation6], %s45
      %s47 = sshll.u32 [#allocation7], 4
      %s48 = int_to_ptr.vmem [resolvable:$true] %s47
      %53 = dma.hbm_to_vmem [thread:$0]  %s3, 2048, %s48, [#allocation6], 128, 128, 8
    $region17: #{tpu_custom_call.1} parent=1 // pred_fallthru
      _
    // Predicated region
    $region18: #{tpu_custom_call.1} parent=1 // pred_check
      _
    $region19: #{tpu_custom_call.1} parent=1 // pred_check_branch
      %55 = sbr.rel (0) target = $region21
    $region20: #{tpu_custom_call.1} parent=1 // pred_region
      _
    $region21: #{tpu_custom_call.1} parent=1 // pred_fallthru
      _
    // Predicated region
    $region22: #{tpu_custom_call.1} parent=1 // pred_check
      _
    $region23: #{tpu_custom_call.1} parent=1 // pred_check_branch
      %57 = sbr.rel (0) target = $region25
    $region24: #{tpu_custom_call.1} parent=1 // pred_region
      %s59 = ssub.s32 2048, 2048
      %60 = vsyncadd [#allocation9], %s59
      %s61 = sshll.u32 [#allocation8], 4
      %s62 = int_to_ptr.vmem [resolvable:$true] %s61
      %67 = dma.hbm_to_vmem [thread:$0]  %s5, 2048, %s62, [#allocation9], 128, 128, 8
    $region25: #{tpu_custom_call.1} parent=1 // pred_fallthru
      _
    // Predicated region
    $region26: #{tpu_custom_call.1} parent=1 // pred_check
      _
    $region27: #{tpu_custom_call.1} parent=1 // pred_check_branch
      %69 = sbr.rel (0) target = $region29
    $region28: #{tpu_custom_call.1} parent=1 // pred_region
      _
    $region29: #{tpu_custom_call.1} parent=1 // pred_fallthru
      _
    // Predicated region
    $region30: #{tpu_custom_call.1} parent=1 // pred_check
      _
    $region31: #{tpu_custom_call.1} parent=1 // pred_check_branch
      %71 = sbr.rel (0) target = $region33
    $region32: #{tpu_custom_call.1} parent=1 // pred_region
      %72 = dma.done [#allocation3], 1024
    $region33: #{tpu_custom_call.1} parent=1 // pred_fallthru
      _
    // Predicated region
    $region34: #{tpu_custom_call.1} parent=1 // pred_check
      _
    $region35: #{tpu_custom_call.1} parent=1 // pred_check_branch
      %74 = sbr.rel (0) target = $region37
    $region36: #{tpu_custom_call.1} parent=1 // pred_region
      %75 = dma.done [#allocation6], 512
    $region37: #{tpu_custom_call.1} parent=1 // pred_fallthru
      _
    // Predicated region
    $region38: #{tpu_custom_call.1} parent=1 // pred_check
      _
    $region39: #{tpu_custom_call.1} parent=1 // pred_check_branch
      %77 = sbr.rel (0) target = $region41
    $region40: #{tpu_custom_call.1} parent=1 // pred_region
      %78 = dma.done [#allocation6], 2048
    $region41: #{tpu_custom_call.1} parent=1 // pred_fallthru
      _
    // Predicated region
    $region42: #{tpu_custom_call.1} parent=1 // pred_check
      _
    $region43: #{tpu_custom_call.1} parent=1 // pred_check_branch
      %80 = sbr.rel (0) target = $region45
    $region44: #{tpu_custom_call.1} parent=1 // pred_region
      %81 = dma.done [#allocation9], 2048
    $region45: #{tpu_custom_call.1} parent=1 // pred_fallthru
      _
    %v82 = vld [vmem:[#allocation2] sm:$0xff]
    %v83 = vld [vmem:[#allocation2 + $0x8] sm:$0xff]
    %v84 = vld [vmem:[#allocation2 + $0x10] sm:$0xff]
    %v85 = vld [vmem:[#allocation2 + $0x18] sm:$0xff]
    %v86 = vld [vmem:[#allocation2 + $0x20] sm:$0xff]
    %v87 = vld [vmem:[#allocation2 + $0x28] sm:$0xff]
    %v88 = vld [vmem:[#allocation2 + $0x30] sm:$0xff]
    %v89 = vld [vmem:[#allocation2 + $0x38] sm:$0xff]
    %vm90 = vcmask 261120
    %v91 = vsel %vm90, %v82, 0.0
    %v92 = vrot.slane %v91, 4
    %v93 = vadd.f32 %v91, %v92
    %v94 = vrot.slane %v93, 2
    %v95 = vadd.f32 %v93, %v94
    %v96 = vrot.slane %v95, 1
    %v97 = vadd.f32 %v95, %v96
    %v98 = vsel %vm90, %v83, 0.0
    %v99 = vrot.slane %v98, 4
    %v100 = vadd.f32 %v98, %v99
    %v101 = vrot.slane %v100, 2
    %v102 = vadd.f32 %v100, %v101
    %v103 = vrot.slane %v102, 1
    %v104 = vadd.f32 %v102, %v103
    %v105 = vsel %vm90, %v84, 0.0
    %v106 = vrot.slane %v105, 4
    %v107 = vadd.f32 %v105, %v106
    %v108 = vrot.slane %v107, 2
    %v109 = vadd.f32 %v107, %v108
    %v110 = vrot.slane %v109, 1
    %v111 = vadd.f32 %v109, %v110
    %v112 = vsel %vm90, %v85, 0.0
    %v113 = vrot.slane %v112, 4
    %v114 = vadd.f32 %v112, %v113
    %v115 = vrot.slane %v114, 2
    %v116 = vadd.f32 %v114, %v115
    %v117 = vrot.slane %v116, 1
    %v118 = vadd.f32 %v116, %v117
    %v119 = vsel %vm90, %v86, 0.0
    %v120 = vrot.slane %v119, 4
    %v121 = vadd.f32 %v119, %v120
    %v122 = vrot.slane %v121, 2
    %v123 = vadd.f32 %v121, %v122
    %v124 = vrot.slane %v123, 1
    %v125 = vadd.f32 %v123, %v124
    %v126 = vsel %vm90, %v87, 0.0
    %v127 = vrot.slane %v126, 4
    %v128 = vadd.f32 %v126, %v127
    %v129 = vrot.slane %v128, 2
    %v130 = vadd.f32 %v128, %v129
    %v131 = vrot.slane %v130, 1
    %v132 = vadd.f32 %v130, %v131
    %v133 = vsel %vm90, %v88, 0.0
    %v134 = vrot.slane %v133, 4
    %v135 = vadd.f32 %v133, %v134
    %v136 = vrot.slane %v135, 2
    %v137 = vadd.f32 %v135, %v136
    %v138 = vrot.slane %v137, 1
    %v139 = vadd.f32 %v137, %v138
    %v140 = vsel %vm90, %v89, 0.0
    %v141 = vrot.slane %v140, 4
    %v142 = vadd.f32 %v140, %v141
    %v143 = vrot.slane %v142, 2
    %v144 = vadd.f32 %v142, %v143
    %v145 = vrot.slane %v144, 1
    %v146 = vadd.f32 %v144, %v145
    %v147 = vld [vmem:[#allocation5] sm:$0xff]
    %v148 = vld [vmem:[#allocation5 + $0x8] sm:$0xff]
    %v149 = vld [vmem:[#allocation5 + $0x10] sm:$0xff]
    %v150 = vld [vmem:[#allocation5 + $0x18] sm:$0xff]
    %v151 = vld [vmem:[%s2] sm:$0x1]
    %v153 = vlaneseq
    %v154 = vshrl.u32 %v153, 7
    %v155 = vsub.s32 0, %v154
    %v156 = vrot.slane %v151, %v155
    %vm166 = vcmask 1041409
    %v167 = vsel %vm166, %v104, %v97
    %vm168 = vcmask 1042434
    %v169 = vsel %vm168, %v111, %v167
    %vm170 = vcmask 1043459
    %v171 = vsel %vm170, %v118, %v169
    %vm172 = vcmask 1044484
    %v173 = vsel %vm172, %v125, %v171
    %vm174 = vcmask 1045509
    %v175 = vsel %vm174, %v132, %v173
    %vm176 = vcmask 1046534
    %v177 = vsel %vm176, %v139, %v175
    %vm178 = vcmask 1047559
    %v179 = vsel %vm178, %v146, %v177
    %v180 = vsel %vm90, %v179, 0
    %182 = vmatprep.subr.mxu0 0.0
    %183 = vmatpush1.msra.mxu0 %v147
    %184 = vmatprep.subr.mxu0 0.0
    %185 = vmatpush1.msra.mxu0 %v148
    %186 = vmatprep.subr.mxu0 0.0
    %187 = vmatpush1.msra.mxu0 %v149
    %188 = vmatprep.subr.mxu0 0.0
    %189 = vmatpush1.msra.mxu0 %v150
    %190 = vmatprep.subr.mxu0 0.0
    %191 = vmatpush1.msra.mxu0 0.0
    %192 = vmatprep.subr.mxu0 0.0
    %193 = vmatpush1.msra.mxu0 0.0
    %194 = vmatprep.subr.mxu0 0.0
    %195 = vmatpush1.msra.mxu0 0.0
    %196 = vmatprep.subr.mxu0 0.0
    %197 = vmatpush1.msra.mxu0 0.0
    %198 = vmatprep.subr.mxu0 0.0
    %199 = vmatpush1.msra.mxu0 0.0
    %200 = vmatprep.subr.mxu0 0.0
    %201 = vmatpush1.msra.mxu0 0.0
    %202 = vmatprep.subr.mxu0 0.0
    %203 = vmatpush1.msra.mxu0 0.0
    %204 = vmatprep.subr.mxu0 0.0
    %205 = vmatpush1.msra.mxu0 0.0
    %206 = vmatprep.subr.mxu0 0.0
    %207 = vmatpush1.msra.mxu0 0.0
    %208 = vmatprep.subr.mxu0 0.0
    %209 = vmatpush1.msra.mxu0 0.0
    %210 = vmatprep.subr.mxu0 0.0
    %211 = vmatpush1.msra.mxu0 0.0
    %212 = vmatprep.subr.mxu0 0.0
    %213 = vmatpush1.msra.mxu0 0.0
    %214 = vmatprep.subr.mxu0 0.0
    %215 = vmatpush1.msra.mxu0 0.0
    %216 = vmatprep.subr.mxu0 0.0
    %217 = vmatpush1.msra.mxu0 0.0
    %218 = vmatprep.subr.mxu0 0.0
    %219 = vmatpush1.msra.mxu0 0.0
    %220 = vmatprep.subr.mxu0 0.0
    %221 = vmatpush1.msra.mxu0 0.0
    %222 = vmatprep.subr.mxu0 0.0
    %223 = vmatpush1.msra.mxu0 0.0
    %224 = vmatprep.subr.mxu0 0.0
    %225 = vmatpush1.msra.mxu0 0.0
    %226 = vmatprep.subr.mxu0 0.0
    %227 = vmatpush1.msra.mxu0 0.0
    %228 = vmatprep.subr.mxu0 0.0
    %229 = vmatpush1.msra.mxu0 0.0
    %230 = vmatprep.subr.mxu0 0.0
    %231 = vmatpush1.msra.mxu0 0.0
    %232 = vmatprep.subr.mxu0 0.0
    %233 = vmatpush1.msra.mxu0 0.0
    %234 = vmatprep.subr.mxu0 0.0
    %235 = vmatpush1.msra.mxu0 0.0
    %236 = vmatprep.subr.mxu0 0.0
    %237 = vmatpush1.msra.mxu0 0.0
    %238 = vmatprep.subr.mxu0 0.0
    %239 = vmatpush1.msra.mxu0 0.0
    %240 = vmatprep.subr.mxu0 0.0
    %241 = vmatpush1.msra.mxu0 0.0
    %242 = vmatprep.subr.mxu0 0.0
    %243 = vmatpush1.msra.mxu0 0.0
    %244 = vmatprep.subr.mxu0 0.0
    %245 = vmatpush1.msra.mxu0 0.0
    %246 = vmatprep.mubr.f32.mxu0 0.0
    %247 = vmatmul.mubr.f32.gmra.mrb[0].mxu0 %v180
    %v248 = vpop.f32.mrb[0].mxu0
    %v249 = vadd.f32 %v156, %v248
    %v250 = vpop.f32.mrb[0].mxu0
    %251 = vdwg.mxu0
    %v252 = vmax.f32 %v249, 0.0
    %v253 = vld [vmem:[#allocation7] sm:$0xff]
    %v254 = vld [vmem:[#allocation7 + $0x8] sm:$0xff]
    %v255 = vld [vmem:[#allocation7 + $0x10] sm:$0xff]
    %v256 = vld [vmem:[#allocation7 + $0x18] sm:$0xff]
    %v257 = vld [vmem:[#allocation7 + $0x20] sm:$0xff]
    %v258 = vld [vmem:[#allocation7 + $0x28] sm:$0xff]
    %v259 = vld [vmem:[#allocation7 + $0x30] sm:$0xff]
    %v260 = vld [vmem:[#allocation7 + $0x38] sm:$0xff]
    %v261 = vld [vmem:[#allocation7 + $0x40] sm:$0xff]
    %v262 = vld [vmem:[#allocation7 + $0x48] sm:$0xff]
    %v263 = vld [vmem:[#allocation7 + $0x50] sm:$0xff]
    %v264 = vld [vmem:[#allocation7 + $0x58] sm:$0xff]
    %v265 = vld [vmem:[#allocation7 + $0x60] sm:$0xff]
    %v266 = vld [vmem:[#allocation7 + $0x68] sm:$0xff]
    %v267 = vld [vmem:[#allocation7 + $0x70] sm:$0xff]
    %v268 = vld [vmem:[#allocation7 + $0x78] sm:$0xff]
    %v269 = vld [vmem:[%s4] sm:$0x1]
    %v271 = vlaneseq
    %v272 = vshrl.u32 %v271, 7
    %v273 = vsub.s32 0, %v272
    %v274 = vrot.slane %v269, %v273
    %276 = vmatprep.subr.mxu0 0.0
    %277 = vmatpush1.msra.mxu0 %v253
    %278 = vmatprep.subr.mxu0 0.0
    %279 = vmatpush1.msra.mxu0 %v254
    %280 = vmatprep.subr.mxu0 0.0
    %281 = vmatpush1.msra.mxu0 %v255
    %282 = vmatprep.subr.mxu0 0.0
    %283 = vmatpush1.msra.mxu0 %v256
    %284 = vmatprep.subr.mxu0 0.0
    %285 = vmatpush1.msra.mxu0 %v257
    %286 = vmatprep.subr.mxu0 0.0
    %287 = vmatpush1.msra.mxu0 %v258
    %288 = vmatprep.subr.mxu0 0.0
    %289 = vmatpush1.msra.mxu0 %v259
    %290 = vmatprep.subr.mxu0 0.0
    %291 = vmatpush1.msra.mxu0 %v260
    %292 = vmatprep.subr.mxu0 0.0
    %293 = vmatpush1.msra.mxu0 %v261
    %294 = vmatprep.subr.mxu0 0.0
    %295 = vmatpush1.msra.mxu0 %v262
    %296 = vmatprep.subr.mxu0 0.0
    %297 = vmatpush1.msra.mxu0 %v263
    %298 = vmatprep.subr.mxu0 0.0
    %299 = vmatpush1.msra.mxu0 %v264
    %300 = vmatprep.subr.mxu0 0.0
    %301 = vmatpush1.msra.mxu0 %v265
    %302 = vmatprep.subr.mxu0 0.0
    %303 = vmatpush1.msra.mxu0 %v266
    %304 = vmatprep.subr.mxu0 0.0
    %305 = vmatpush1.msra.mxu0 %v267
    %306 = vmatprep.subr.mxu0 0.0
    %307 = vmatpush1.msra.mxu0 %v268
    %308 = vmatprep.subr.mxu0 0.0
    %309 = vmatpush1.msra.mxu0 0.0
    %310 = vmatprep.subr.mxu0 0.0
    %311 = vmatpush1.msra.mxu0 0.0
    %312 = vmatprep.subr.mxu0 0.0
    %313 = vmatpush1.msra.mxu0 0.0
    %314 = vmatprep.subr.mxu0 0.0
    %315 = vmatpush1.msra.mxu0 0.0
    %316 = vmatprep.subr.mxu0 0.0
    %317 = vmatpush1.msra.mxu0 0.0
    %318 = vmatprep.subr.mxu0 0.0
    %319 = vmatpush1.msra.mxu0 0.0
    %320 = vmatprep.subr.mxu0 0.0
    %321 = vmatpush1.msra.mxu0 0.0
    %322 = vmatprep.subr.mxu0 0.0
    %323 = vmatpush1.msra.mxu0 0.0
    %324 = vmatprep.subr.mxu0 0.0
    %325 = vmatpush1.msra.mxu0 0.0
    %326 = vmatprep.subr.mxu0 0.0
    %327 = vmatpush1.msra.mxu0 0.0
    %328 = vmatprep.subr.mxu0 0.0
    %329 = vmatpush1.msra.mxu0 0.0
    %330 = vmatprep.subr.mxu0 0.0
    %331 = vmatpush1.msra.mxu0 0.0
    %332 = vmatprep.subr.mxu0 0.0
    %333 = vmatpush1.msra.mxu0 0.0
    %334 = vmatprep.subr.mxu0 0.0
    %335 = vmatpush1.msra.mxu0 0.0
    %336 = vmatprep.subr.mxu0 0.0
    %337 = vmatpush1.msra.mxu0 0.0
    %338 = vmatprep.subr.mxu0 0.0
    %339 = vmatpush1.msra.mxu0 0.0
    %340 = vmatprep.mubr.f32.mxu0 0.0
    %341 = vmatmul.mubr.f32.gmra.mrb[0].mxu0 %v252
    %v342 = vpop.f32.mrb[0].mxu0
    %v343 = vadd.f32 %v274, %v342
    %v344 = vpop.f32.mrb[0].mxu0
    %345 = vdwg.mxu0
    %v346 = vmax.f32 %v343, 0.0
    %v347 = vld [vmem:[#allocation8] sm:$0xff]
    %v348 = vld [vmem:[#allocation8 + $0x8] sm:$0xff]
    %v349 = vld [vmem:[#allocation8 + $0x10] sm:$0xff]
    %v350 = vld [vmem:[#allocation8 + $0x18] sm:$0xff]
    %v351 = vld [vmem:[#allocation8 + $0x20] sm:$0xff]
    %v352 = vld [vmem:[#allocation8 + $0x28] sm:$0xff]
    %v353 = vld [vmem:[#allocation8 + $0x30] sm:$0xff]
    %v354 = vld [vmem:[#allocation8 + $0x38] sm:$0xff]
    %v355 = vld [vmem:[#allocation8 + $0x40] sm:$0xff]
    %v356 = vld [vmem:[#allocation8 + $0x48] sm:$0xff]
    %v357 = vld [vmem:[#allocation8 + $0x50] sm:$0xff]
    %v358 = vld [vmem:[#allocation8 + $0x58] sm:$0xff]
    %v359 = vld [vmem:[#allocation8 + $0x60] sm:$0xff]
    %v360 = vld [vmem:[#allocation8 + $0x68] sm:$0xff]
    %v361 = vld [vmem:[#allocation8 + $0x70] sm:$0xff]
    %v362 = vld [vmem:[#allocation8 + $0x78] sm:$0xff]
    %v363 = vld [vmem:[%s6] sm:$0x1]
    %v365 = vlaneseq
    %v366 = vshrl.u32 %v365, 7
    %v367 = vsub.s32 0, %v366
    %v368 = vrot.slane %v363, %v367
    %370 = vmatprep.subr.mxu0 0.0
    %371 = vmatpush1.msra.mxu0 %v347
    %372 = vmatprep.subr.mxu0 0.0
    %373 = vmatpush1.msra.mxu0 %v348
    %374 = vmatprep.subr.mxu0 0.0
    %375 = vmatpush1.msra.mxu0 %v349
    %376 = vmatprep.subr.mxu0 0.0
    %377 = vmatpush1.msra.mxu0 %v350
    %378 = vmatprep.subr.mxu0 0.0
    %379 = vmatpush1.msra.mxu0 %v351
    %380 = vmatprep.subr.mxu0 0.0
    %381 = vmatpush1.msra.mxu0 %v352
    %382 = vmatprep.subr.mxu0 0.0
    %383 = vmatpush1.msra.mxu0 %v353
    %384 = vmatprep.subr.mxu0 0.0
    %385 = vmatpush1.msra.mxu0 %v354
    %386 = vmatprep.subr.mxu0 0.0
    %387 = vmatpush1.msra.mxu0 %v355
    %388 = vmatprep.subr.mxu0 0.0
    %389 = vmatpush1.msra.mxu0 %v356
    %390 = vmatprep.subr.mxu0 0.0
    %391 = vmatpush1.msra.mxu0 %v357
    %392 = vmatprep.subr.mxu0 0.0
    %393 = vmatpush1.msra.mxu0 %v358
    %394 = vmatprep.subr.mxu0 0.0
    %395 = vmatpush1.msra.mxu0 %v359
    %396 = vmatprep.subr.mxu0 0.0
    %397 = vmatpush1.msra.mxu0 %v360
    %398 = vmatprep.subr.mxu0 0.0
    %399 = vmatpush1.msra.mxu0 %v361
    %400 = vmatprep.subr.mxu0 0.0
    %401 = vmatpush1.msra.mxu0 %v362
    %402 = vmatprep.subr.mxu0 0.0
    %403 = vmatpush1.msra.mxu0 0.0
    %404 = vmatprep.subr.mxu0 0.0
    %405 = vmatpush1.msra.mxu0 0.0
    %406 = vmatprep.subr.mxu0 0.0
    %407 = vmatpush1.msra.mxu0 0.0
    %408 = vmatprep.subr.mxu0 0.0
    %409 = vmatpush1.msra.mxu0 0.0
    %410 = vmatprep.subr.mxu0 0.0
    %411 = vmatpush1.msra.mxu0 0.0
    %412 = vmatprep.subr.mxu0 0.0
    %413 = vmatpush1.msra.mxu0 0.0
    %414 = vmatprep.subr.mxu0 0.0
    %415 = vmatpush1.msra.mxu0 0.0
    %416 = vmatprep.subr.mxu0 0.0
    %417 = vmatpush1.msra.mxu0 0.0
    %418 = vmatprep.subr.mxu0 0.0
    %419 = vmatpush1.msra.mxu0 0.0
    %420 = vmatprep.subr.mxu0 0.0
    %421 = vmatpush1.msra.mxu0 0.0
    %422 = vmatprep.subr.mxu0 0.0
    %423 = vmatpush1.msra.mxu0 0.0
    %424 = vmatprep.subr.mxu0 0.0
    %425 = vmatpush1.msra.mxu0 0.0
    %426 = vmatprep.subr.mxu0 0.0
    %427 = vmatpush1.msra.mxu0 0.0
    %428 = vmatprep.subr.mxu0 0.0
    %429 = vmatpush1.msra.mxu0 0.0
    %430 = vmatprep.subr.mxu0 0.0
    %431 = vmatpush1.msra.mxu0 0.0
    %432 = vmatprep.subr.mxu0 0.0
    %433 = vmatpush1.msra.mxu0 0.0
    %434 = vmatprep.mubr.f32.mxu0 0.0
    %435 = vmatmul.mubr.f32.gmra.mrb[0].mxu0 %v346
    %v436 = vpop.f32.mrb[0].mxu0
    %v437 = vadd.f32 %v368, %v436
    %v438 = vpop.f32.mrb[0].mxu0
    %439 = vdwg.mxu0
    %440 = vst [vmem:[#allocation10] sm:$0xff] %v437
    // Predicated region
    $region46: #{tpu_custom_call.1} parent=1 // pred_check
      _
    $region47: #{tpu_custom_call.1} parent=1 // pred_check_branch
      %442 = sbr.rel (0) target = $region49
    $region48: #{tpu_custom_call.1} parent=1 // pred_region
      %s444 = ssub.s32 128, 128
      %445 = vsyncadd [#allocation4], %s444
      %s447 = sshll.u32 [#allocation10], 4
      %s448 = int_to_ptr.vmem [resolvable:$true] %s447
      %450 = dma.vmem_to_hbm [thread:$0]  %s448, 128, %s7, [#allocation4]
    $region49: #{tpu_custom_call.1} parent=1 // pred_fallthru
      _
    // Predicated region
    $region50: #{tpu_custom_call.1} parent=1 // pred_check
      _
    $region51: #{tpu_custom_call.1} parent=1 // pred_check_branch
      %452 = sbr.rel (0) target = $region53
    $region52: #{tpu_custom_call.1} parent=1 // pred_region
      %453 = dma.done [#allocation4], 128
    $region53: #{tpu_custom_call.1} parent=1 // pred_fallthru
      _
    %454 = vsyncpa [#allocation3], 1
    %455 = vsyncpa [#allocation6], 1
    %456 = vsyncpa [#allocation9], 1
    %457 = vsyncpa [#allocation4], 1

</llo_original>
